<compile_context>
chip_gen: v7x
topology: tpu7x:2x2x1
jax: 0.10.0
libtpu: 0.0.40
codegen_flags: <defaults>
</compile_context>

<pallas_src>
import jax
import jax.numpy as jnp
from jax.experimental import pallas as pl
from jax.experimental.pallas import tpu as pltpu


_LEAKY_SLOPE = 0.2
_MAX_TILE = 1024            # max batch rows per grid step (fits easily in VMEM)


def _leaky_relu(x):
    return jnp.where(x >= 0, x, _LEAKY_SLOPE * x)


def _round_up(x, m):
    return ((x + m - 1) // m) * m


def _choose_tiling(batch):
    """Pick (block_batch, grid_steps, padded_batch).

    * batch <= 256: one grid step (no pipeline overhead, full-height LHS).
    * batch  > 256: at least 2 steps (feeds both v7x TensorCores) and an even
      step count for load balance; block capped at _MAX_TILE rows so each step
      amortises the ~600-cycle per-step pipeline overhead.
    """
    if batch <= 256:
        block = _round_up(batch, 8)
        steps = 1
    else:
        steps = max(2, -(-batch // _MAX_TILE))
        if steps % 2:
            steps += 1                      # even split across 2 TensorCores
        block = _round_up(-(-batch // steps), 8)
    return block, steps, steps * block


def discriminator_kernel(x_ref, w0_ref, b0_ref, w1_ref, b1_ref, w2_ref, b2_ref,
                         o_ref):
    """Fused 3-layer MLP.

    Layer 0: VPU broadcast-FMAs when n_features <= 8, else MXU (bf16 in, f32 acc).
    Layer 1: MXU (bf16 in, f32 acc) + LeakyReLU on the VPU.
    Layer 2: n_out == 1 -> VPU multiply + XLU cross-lane sum (MXU skipped);
             n_out  > 1 -> MXU.  Sigmoid epilogue on the EUP (tanh identity).
    """
    x = x_ref[...]                                    # (bm, n_features) f32
    bm, n_features = x.shape

    # ---- hidden0: Linear(n_features -> 512) + LeakyReLU(0.2) ----
    b0 = b0_ref[...]                                  # (1, 512) f32
    if n_features <= 8:
        # K is tiny -> a few VPU broadcast-FMAs beat an MXU fill/drain and keep
        # the vex slot free for the real matmul below.
        w0 = w0_ref[...].astype(jnp.float32)          # (n_features, 512)
        h0 = jnp.broadcast_to(b0, (bm, b0.shape[1]))
        for k in range(n_features):                   # static unroll
            h0 = h0 + x[:, k:k + 1] * w0[k:k + 1, :]
    else:
        h0 = jnp.dot(x.astype(jnp.bfloat16), w0_ref[...],
                     preferred_element_type=jnp.float32) + b0
    h0 = _leaky_relu(h0)

    # ---- hidden1: Linear(512 -> 256) + LeakyReLU(0.2) ----
    h1 = jnp.dot(h0.astype(jnp.bfloat16), w1_ref[...],
                 preferred_element_type=jnp.float32)
    h1 = _leaky_relu(h1 + b1_ref[...])

    # ---- out: Linear(256 -> n_out) + Sigmoid ----
    n_out = o_ref.shape[1]
    if n_out == 1:
        # w2 arrives pre-transposed as a lane-dense (1, 256) f32 row.
        # Elementwise multiply (VPU) + cross-lane sum (XLU): the MXU is idle
        # here instead of pushing an N=1 vmatmul.
        z = jnp.sum(h1 * w2_ref[...], axis=-1, keepdims=True)    # (bm, 1)
    else:
        z = jnp.dot(h1.astype(jnp.bfloat16), w2_ref[...],
                    preferred_element_type=jnp.float32)
    z = z + b2_ref[...]
    # Exact sigmoid via tanh: single EUP op, no approx reciprocal, no reliance
    # on exp overflow for very negative z.
    o_ref[...] = (0.5 * (jnp.tanh(0.5 * z) + 1.0)).astype(o_ref.dtype)


@jax.jit
def discriminator_forward(x, w0, b0, w1, b1, w2, b2):
    """Run the fused discriminator MLP, tiled over the batch axis."""
    batch, n_features = x.shape
    n_out = w2.shape[1]

    block_batch, steps, padded = _choose_tiling(batch)
    if padded != batch:
        x = jnp.pad(x, ((0, padded - batch), (0, 0)))
    grid = (steps,)

    # For n_out == 1, hand the kernel w2 as a lane-dense (1, 256) f32 row so the
    # final layer runs on the VPU/XLU (no in-kernel relayout, done once here).
    if n_out == 1:
        w2_arg = w2.astype(jnp.float32).reshape(1, -1)
    else:
        w2_arg = w2

    def rep(shape):
        # Weights / biases: one full-array block with a constant index_map ->
        # VMEM-resident across the whole grid (~0.4 MB total, trivially fits
        # every generation including v7x's 64 MiB VMEM).
        return pl.BlockSpec(shape, lambda i: (0, 0))

    # Advisory cost estimate: helps XLA overlap the weight DMA / schedule
    # neighbouring ops when the kernel is launch-latency bound (tiny batches).
    flops = 2 * padded * (n_features * 512 + 512 * 256 + 256 * n_out)
    bytes_accessed = (
        x.size * x.dtype.itemsize
        + w0.size * w0.dtype.itemsize + b0.size * b0.dtype.itemsize
        + w1.size * w1.dtype.itemsize + b1.size * b1.dtype.itemsize
        + w2_arg.size * w2_arg.dtype.itemsize + b2.size * b2.dtype.itemsize
        + padded * n_out * 4)
    cost = pl.CostEstimate(flops=flops,
                           transcendentals=padded * n_out,
                           bytes_accessed=bytes_accessed)

    out = pl.pallas_call(
        discriminator_kernel,
        out_shape=jax.ShapeDtypeStruct((padded, n_out), jnp.float32),
        grid=grid,
        in_specs=[
            pl.BlockSpec((block_batch, n_features), lambda i: (i, 0)),  # x
            rep(w0.shape), rep(b0.shape),                               # hidden0
            rep(w1.shape), rep(b1.shape),                               # hidden1
            rep(w2_arg.shape), rep(b2.shape),                           # out
        ],
        # TODO(synk): if n_out ever grows, pad it to a multiple of 128 here for
        # lane-dense (unmasked) output stores; with n_out=1 traffic is tiny.
        out_specs=pl.BlockSpec((block_batch, n_out), lambda i: (i, 0)),
        compiler_params=pltpu.CompilerParams(
            dimension_semantics=("parallel",),
        ),
        cost_estimate=cost,
    )(x, w0, b0, w1, b1, w2_arg, b2)
    return out[:batch]


def init_linear_params(key, fan_in, fan_out):
    """torch.nn.Linear-style U(-1/sqrt(fan_in), +) init.

    Weight returned as (fan_in, fan_out) bfloat16 (already transposed for
    x @ W, halves weight DMA and doubles MXU rate); bias as (1, fan_out) f32.
    """
    kw, kb = jax.random.split(key)
    bound = 1.0 / jnp.sqrt(float(fan_in))
    w = jax.random.uniform(kw, (fan_in, fan_out), jnp.float32, -bound, bound)
    b = jax.random.uniform(kb, (1, fan_out), jnp.float32, -bound, bound)
    return w.astype(jnp.bfloat16), b


def reference_forward_matched(x, w0, b0, w1, b1, w2, b2):
    """Pure-JAX reference mirroring the kernel's dtype strategy."""
    n_features = x.shape[1]
    n_out = w2.shape[1]
    if n_features <= 8:
        h0 = x @ w0.astype(jnp.float32) + b0
    else:
        h0 = jnp.dot(x.astype(jnp.bfloat16), w0,
                     preferred_element_type=jnp.float32) + b0
    h0 = _leaky_relu(h0)
    h1 = jnp.dot(h0.astype(jnp.bfloat16), w1,
                 preferred_element_type=jnp.float32) + b1
    h1 = _leaky_relu(h1)
    if n_out == 1:
        z = h1 @ w2.astype(jnp.float32) + b2
    else:
        z = jnp.dot(h1.astype(jnp.bfloat16), w2,
                    preferred_element_type=jnp.float32) + b2
    return jax.nn.sigmoid(z)


def reference_forward_f32(x, w0, b0, w1, b1, w2, b2):
    """Full-f32 reference (PyTorch fidelity)."""
    h0 = _leaky_relu(x @ w0.astype(jnp.float32) + b0)
    h1 = _leaky_relu(h0 @ w1.astype(jnp.float32) + b1)
    return jax.nn.sigmoid(h1 @ w2.astype(jnp.float32) + b2)


if __name__ == "__main__":
    # Module hyper-parameters (DiscriminatorNet(n_features, n_out)).
    n_features = 4
    n_out = 1

    key = jax.random.PRNGKey(0)
    k_x, k0, k1, k2, k_x2 = jax.random.split(key, 5)

    w0, b0 = init_linear_params(k0, n_features, 512)   # hidden0: Linear(nf, 512)
    w1, b1 = init_linear_params(k1, 512, 256)          # hidden1: Linear(512, 256)
    w2, b2 = init_linear_params(k2, 256, n_out)        # out:     Linear(256, n_out)

    # --- small batch (single-step grid) ---
    batch = 16
    x = jax.random.normal(k_x, (batch, n_features), dtype=jnp.float32)
    y = jax.block_until_ready(discriminator_forward(x, w0, b0, w1, b1, w2, b2))
    assert y.shape == (batch, n_out)
    y_match = reference_forward_matched(x, w0, b0, w1, b1, w2, b2)
    y_f32 = reference_forward_f32(x, w0, b0, w1, b1, w2, b2)
    assert jnp.allclose(y, y_match, atol=2e-3, rtol=2e-3), "mismatch vs matched-dtype ref"
    assert jnp.allclose(y, y_f32, atol=2e-2, rtol=2e-2), "mismatch vs f32 (PyTorch) ref"

    # --- larger batch (multi-step parallel grid + batch padding path) ---
    batch2 = 384
    x2 = jax.random.normal(k_x2, (batch2, n_features), dtype=jnp.float32)
    y2 = jax.block_until_ready(discriminator_forward(x2, w0, b0, w1, b1, w2, b2))
    assert y2.shape == (batch2, n_out)
    y2_f32 = reference_forward_f32(x2, w0, b0, w1, b1, w2, b2)
    assert jnp.allclose(y2, y2_f32, atol=2e-2, rtol=2e-2), "mismatch vs f32 ref (batch 384)"

    print("KERNEL_OK")
</pallas_src>

<mosaic_0001>
module attributes {stable_mosaic.version = 11 : i64} {
  func.func @discriminator_kernel(%arg0: i32, %arg1: memref<16x4xf32, #tpu.memory_space<vmem>>, %arg2: memref<4x512xbf16, #tpu.memory_space<vmem>>, %arg3: memref<1x512xf32, #tpu.memory_space<vmem>>, %arg4: memref<512x256xbf16, #tpu.memory_space<vmem>>, %arg5: memref<1x256xf32, #tpu.memory_space<vmem>>, %arg6: memref<1x256xf32, #tpu.memory_space<vmem>>, %arg7: memref<1x1xf32, #tpu.memory_space<vmem>>, %arg8: memref<16x1xf32, #tpu.memory_space<vmem>>) attributes {dimension_semantics = [#tpu.dimension_semantics<parallel>], iteration_bounds = array<i64: 1>, scalar_prefetch = 0 : i64, scratch_operands = 0 : i64, tpu.core_type = #tpu.core_type<tc>, window_params = [{transform_indices = @transform_0, window_bounds = array<i64: 16, 4>}, {pipeline_mode = #tpu.pipeline_mode<synchronous>, transform_indices = @transform_1, window_bounds = array<i64: 4, 512>}, {pipeline_mode = #tpu.pipeline_mode<synchronous>, transform_indices = @transform_2, window_bounds = array<i64: 1, 512>}, {pipeline_mode = #tpu.pipeline_mode<synchronous>, transform_indices = @transform_3, window_bounds = array<i64: 512, 256>}, {pipeline_mode = #tpu.pipeline_mode<synchronous>, transform_indices = @transform_4, window_bounds = array<i64: 1, 256>}, {pipeline_mode = #tpu.pipeline_mode<synchronous>, transform_indices = @transform_5, window_bounds = array<i64: 1, 256>}, {pipeline_mode = #tpu.pipeline_mode<synchronous>, transform_indices = @transform_6, window_bounds = array<i64: 1, 1>}, {transform_indices = @transform_7, window_bounds = array<i64: 16, 1>}]} {
    %c0 = arith.constant 0 : index
    %c0_0 = arith.constant 0 : index
    %0 = vector.load %arg1[%c0, %c0_0] : memref<16x4xf32, #tpu.memory_space<vmem>>, vector<16x4xf32>
    %c0_1 = arith.constant 0 : index
    %c0_2 = arith.constant 0 : index
    %1 = vector.load %arg3[%c0_1, %c0_2] : memref<1x512xf32, #tpu.memory_space<vmem>>, vector<1x512xf32>
    %c0_3 = arith.constant 0 : index
    %c0_4 = arith.constant 0 : index
    %2 = vector.load %arg2[%c0_3, %c0_4] : memref<4x512xbf16, #tpu.memory_space<vmem>>, vector<4x512xbf16>
    %3 = arith.extf %2 : vector<4x512xbf16> to vector<4x512xf32>
    %4 = vector.shape_cast %1 : vector<1x512xf32> to vector<1x512xf32>
    %5 = vector.broadcast %4 : vector<1x512xf32> to vector<16x512xf32>
    %6 = vector.extract_strided_slice %0 {offsets = [0, 0], sizes = [16, 1], strides = [1, 1]} : vector<16x4xf32> to vector<16x1xf32>
    %7 = vector.extract_strided_slice %3 {offsets = [0, 0], sizes = [1, 512], strides = [1, 1]} : vector<4x512xf32> to vector<1x512xf32>
    %8 = vector.broadcast %6 : vector<16x1xf32> to vector<16x512xf32>
    %9 = vector.broadcast %7 : vector<1x512xf32> to vector<16x512xf32>
    %10 = arith.mulf %8, %9 : vector<16x512xf32>
    %11 = arith.addf %5, %10 : vector<16x512xf32>
    %12 = vector.extract_strided_slice %0 {offsets = [0, 1], sizes = [16, 1], strides = [1, 1]} : vector<16x4xf32> to vector<16x1xf32>
    %13 = vector.extract_strided_slice %3 {offsets = [1, 0], sizes = [1, 512], strides = [1, 1]} : vector<4x512xf32> to vector<1x512xf32>
    %14 = vector.broadcast %12 : vector<16x1xf32> to vector<16x512xf32>
    %15 = vector.broadcast %13 : vector<1x512xf32> to vector<16x512xf32>
    %16 = arith.mulf %14, %15 : vector<16x512xf32>
    %17 = arith.addf %11, %16 : vector<16x512xf32>
    %18 = vector.extract_strided_slice %0 {offsets = [0, 2], sizes = [16, 1], strides = [1, 1]} : vector<16x4xf32> to vector<16x1xf32>
    %19 = vector.extract_strided_slice %3 {offsets = [2, 0], sizes = [1, 512], strides = [1, 1]} : vector<4x512xf32> to vector<1x512xf32>
    %20 = vector.broadcast %18 : vector<16x1xf32> to vector<16x512xf32>
    %21 = vector.broadcast %19 : vector<1x512xf32> to vector<16x512xf32>
    %22 = arith.mulf %20, %21 : vector<16x512xf32>
    %23 = arith.addf %17, %22 : vector<16x512xf32>
    %24 = vector.extract_strided_slice %0 {offsets = [0, 3], sizes = [16, 1], strides = [1, 1]} : vector<16x4xf32> to vector<16x1xf32>
    %25 = vector.extract_strided_slice %3 {offsets = [3, 0], sizes = [1, 512], strides = [1, 1]} : vector<4x512xf32> to vector<1x512xf32>
    %26 = vector.broadcast %24 : vector<16x1xf32> to vector<16x512xf32>
    %27 = vector.broadcast %25 : vector<1x512xf32> to vector<16x512xf32>
    %28 = arith.mulf %26, %27 : vector<16x512xf32>
    %29 = arith.addf %23, %28 : vector<16x512xf32>
    %cst = arith.constant 0.000000e+00 : f32
    %30 = vector.broadcast %cst : f32 to vector<16x512xf32>
    %31 = arith.cmpf oge, %29, %30 : vector<16x512xf32>
    %cst_5 = arith.constant 2.000000e-01 : f32
    %32 = vector.broadcast %cst_5 : f32 to vector<16x512xf32>
    %33 = arith.mulf %32, %29 : vector<16x512xf32>
    %34 = arith.select %31, %29, %33 : vector<16x512xi1>, vector<16x512xf32>
    %35 = arith.truncf %34 : vector<16x512xf32> to vector<16x512xbf16>
    %c0_6 = arith.constant 0 : index
    %c0_7 = arith.constant 0 : index
    %36 = vector.load %arg4[%c0_6, %c0_7] : memref<512x256xbf16, #tpu.memory_space<vmem>>, vector<512x256xbf16>
    %cst_8 = arith.constant dense<0.000000e+00> : vector<16x256xf32>
    %37 = tpu.matmul %35, %36, %cst_8 {dimension_numbers = #tpu.dot_dimension_numbers<[1], [0], [0], [1], [0, 0, 1, 1], [], []>} : vector<16x512xbf16>, vector<512x256xbf16>, vector<16x256xf32> -> vector<16x256xf32>
    %c0_9 = arith.constant 0 : index
    %c0_10 = arith.constant 0 : index
    %38 = vector.load %arg5[%c0_9, %c0_10] : memref<1x256xf32, #tpu.memory_space<vmem>>, vector<1x256xf32>
    %39 = vector.broadcast %38 : vector<1x256xf32> to vector<16x256xf32>
    %40 = arith.addf %37, %39 : vector<16x256xf32>
    %cst_11 = arith.constant 0.000000e+00 : f32
    %41 = vector.broadcast %cst_11 : f32 to vector<16x256xf32>
    %42 = arith.cmpf oge, %40, %41 : vector<16x256xf32>
    %cst_12 = arith.constant 2.000000e-01 : f32
    %43 = vector.broadcast %cst_12 : f32 to vector<16x256xf32>
    %44 = arith.mulf %43, %40 : vector<16x256xf32>
    %45 = arith.select %42, %40, %44 : vector<16x256xi1>, vector<16x256xf32>
    %c0_13 = arith.constant 0 : index
    %c0_14 = arith.constant 0 : index
    %46 = vector.load %arg6[%c0_13, %c0_14] : memref<1x256xf32, #tpu.memory_space<vmem>>, vector<1x256xf32>
    %47 = vector.broadcast %46 : vector<1x256xf32> to vector<16x256xf32>
    %48 = arith.mulf %45, %47 : vector<16x256xf32>
    %cst_15 = arith.constant dense<0.000000e+00> : vector<16xf32>
    %49 = vector.multi_reduction <add>, %48, %cst_15 [1] : vector<16x256xf32> to vector<16xf32>
    %50 = vector.shape_cast %49 : vector<16xf32> to vector<16x1xf32>
    %c0_16 = arith.constant 0 : index
    %c0_17 = arith.constant 0 : index
    %51 = vector.load %arg7[%c0_16, %c0_17] : memref<1x1xf32, #tpu.memory_space<vmem>>, vector<1x1xf32>
    %52 = vector.broadcast %51 : vector<1x1xf32> to vector<16x1xf32>
    %53 = arith.addf %50, %52 : vector<16x1xf32>
    %cst_18 = arith.constant 5.000000e-01 : f32
    %54 = vector.broadcast %cst_18 : f32 to vector<16x1xf32>
    %55 = arith.mulf %54, %53 : vector<16x1xf32>
    %56 = math.tanh %55 : vector<16x1xf32>
    %cst_19 = arith.constant 1.000000e+00 : f32
    %57 = vector.broadcast %cst_19 : f32 to vector<16x1xf32>
    %58 = arith.addf %56, %57 : vector<16x1xf32>
    %cst_20 = arith.constant 5.000000e-01 : f32
    %59 = vector.broadcast %cst_20 : f32 to vector<16x1xf32>
    %60 = arith.mulf %59, %58 : vector<16x1xf32>
    %c0_21 = arith.constant 0 : index
    %c0_22 = arith.constant 0 : index
    %61 = vector.load %arg8[%c0_21, %c0_22] : memref<16x1xf32, #tpu.memory_space<vmem>>, vector<16x1xf32>
    tpu.vector_store %arg8[%c0_21, %c0_22], %60 {strides = array<i32>} : memref<16x1xf32, #tpu.memory_space<vmem>>, vector<16x1xf32>,
    return
  }
  func.func @transform_0(%arg0: i32) -> (i32, i32) {
    %c0_i32 = arith.constant 0 : i32
    %c0_i32_0 = arith.constant 0 : i32
    return %arg0, %c0_i32 : i32, i32
  }
  func.func @transform_1(%arg0: i32) -> (i32, i32) {
    %c0_i32 = arith.constant 0 : i32
    %c0_i32_0 = arith.constant 0 : i32
    %c0_i32_1 = arith.constant 0 : i32
    return %c0_i32, %c0_i32_0 : i32, i32
  }
  func.func @transform_2(%arg0: i32) -> (i32, i32) {
    %c0_i32 = arith.constant 0 : i32
    %c0_i32_0 = arith.constant 0 : i32
    %c0_i32_1 = arith.constant 0 : i32
    return %c0_i32, %c0_i32_0 : i32, i32
  }
  func.func @transform_3(%arg0: i32) -> (i32, i32) {
    %c0_i32 = arith.constant 0 : i32
    %c0_i32_0 = arith.constant 0 : i32
    %c0_i32_1 = arith.constant 0 : i32
    return %c0_i32, %c0_i32_0 : i32, i32
  }
  func.func @transform_4(%arg0: i32) -> (i32, i32) {
    %c0_i32 = arith.constant 0 : i32
    %c0_i32_0 = arith.constant 0 : i32
    %c0_i32_1 = arith.constant 0 : i32
    return %c0_i32, %c0_i32_0 : i32, i32
  }
  func.func @transform_5(%arg0: i32) -> (i32, i32) {
    %c0_i32 = arith.constant 0 : i32
    %c0_i32_0 = arith.constant 0 : i32
    %c0_i32_1 = arith.constant 0 : i32
    return %c0_i32, %c0_i32_0 : i32, i32
  }
  func.func @transform_6(%arg0: i32) -> (i32, i32) {
    %c0_i32 = arith.constant 0 : i32
    %c0_i32_0 = arith.constant 0 : i32
    %c0_i32_1 = arith.constant 0 : i32
    return %c0_i32, %c0_i32_0 : i32, i32
  }
  func.func @transform_7(%arg0: i32) -> (i32, i32) {
    %c0_i32 = arith.constant 0 : i32
    %c0_i32_0 = arith.constant 0 : i32
    return %arg0, %c0_i32 : i32, i32
  }
}

</mosaic_0001>

<llo_original>
// kernel: discriminator_forward.1
$region0: #{discriminator_forward.1}
  #allocation0 [shape = 'u32[]', space=smem, size = 0x4, offset = 0x4, fixed_abs, tag = 'smem constant byte address 0x4 - core index']
  #allocation1 [shape = 'u32[144,128]{1,0:T(1,128)}', space=vmem, size = 0x12000, scoped, tag = 'internal scratch']
  #allocation2 [shape = 'f32[1,1]{1,0:T(1,128)S(1)}', space=vmem, size = 0x200, scoped, tag = 'scoped memory for discriminator_forward.1']
  %s0 = inlined_call_operand.vmem [shape: f32[16,4], index: 0, kind: input, shape index: {}]
  %s1 = inlined_call_operand.vmem [shape: bf16[4,512], index: 1, kind: input, shape index: {}]
  %s2 = inlined_call_operand.vmem [shape: f32[1,512], index: 2, kind: input, shape index: {}]
  %s3 = inlined_call_operand.hbm [shape: bf16[512,256], index: 3, kind: input, shape index: {}]
  %s4 = inlined_call_operand.vmem [shape: f32[1,256], index: 4, kind: input, shape index: {}]
  %s5 = inlined_call_operand.vmem [shape: f32[1,256], index: 5, kind: input, shape index: {}]
  %s6 = inlined_call_operand.<no memory space> [shape: f32[1,1], index: 6, kind: input, shape index: {}]
  %s7 = inlined_call_operand.vmem [shape: f32[16,1], index: 7, kind: output, shape index: {}]
  %s8 = sld [smem:[#allocation0]]
  $region42: #{discriminator_forward.1} parent=0
    _
  %s10 = ssub.s32 1, %s8
  %s11 = scalar_select 0, %s10, %s8
  %v12 = vstv %s6
  %13 = vst [vmem:[#allocation2] sm:$0x1] %v12
  $region1: #{discriminator_forward.1} parent=0
    #allocation3 [shape = 'u8[262144]{0}', space=vmem, size = 0x40000, scoped, tag = 'input window, operand 3, single buffered']
    #allocation4 [shape = 's32[1]{0}', space=sflag, size = 0x4, scoped, tag = 'scoped memory for discriminator_forward.1']
    %14 = vsyncpa [#allocation4], 0
    // Predicated region
    $region2: #{discriminator_forward.1} parent=1 // pred_check
      _
    $region3: #{discriminator_forward.1} parent=1 // pred_check_branch
      %16 = sbr.rel (0) target = $region5
    $region4: #{discriminator_forward.1} parent=1 // pred_region
      _
    $region5: #{discriminator_forward.1} parent=1 // pred_fallthru
      _
    // Predicated region
    $region6: #{discriminator_forward.1} parent=1 // pred_check
      _
    $region7: #{discriminator_forward.1} parent=1 // pred_check_branch
      %18 = sbr.rel (0) target = $region9
    $region8: #{discriminator_forward.1} parent=1 // pred_region
      _
    $region9: #{discriminator_forward.1} parent=1 // pred_fallthru
      _
    // Predicated region
    $region10: #{discriminator_forward.1} parent=1 // pred_check
      _
    $region11: #{discriminator_forward.1} parent=1 // pred_check_branch
      %20 = sbr.rel (0) target = $region13
    $region12: #{discriminator_forward.1} parent=1 // pred_region
      _
    $region13: #{discriminator_forward.1} parent=1 // pred_fallthru
      _
    // Predicated region
    $region14: #{discriminator_forward.1} parent=1 // pred_check
      _
    $region15: #{discriminator_forward.1} parent=1 // pred_check_branch
      %22 = sbr.rel (0) target = $region17
    $region16: #{discriminator_forward.1} parent=1 // pred_region
      %s24 = ssub.s32 8192, 8192
      %25 = vsyncadd [#allocation4], %s24
      %s26 = sshll.u32 [#allocation3], 4
      %s27 = int_to_ptr.vmem [resolvable:$true] %s26
      %32 = dma.hbm_to_vmem [thread:$0]  %s3, 8192, %s27, [#allocation4], 128, 128, 8
    $region17: #{discriminator_forward.1} parent=1 // pred_fallthru
      _
    // Predicated region
    $region18: #{discriminator_forward.1} parent=1 // pred_check
      _
    $region19: #{discriminator_forward.1} parent=1 // pred_check_branch
      %34 = sbr.rel (0) target = $region21
    $region20: #{discriminator_forward.1} parent=1 // pred_region
      _
    $region21: #{discriminator_forward.1} parent=1 // pred_fallthru
      _
    // Predicated region
    $region22: #{discriminator_forward.1} parent=1 // pred_check
      _
    $region23: #{discriminator_forward.1} parent=1 // pred_check_branch
      %36 = sbr.rel (0) target = $region25
    $region24: #{discriminator_forward.1} parent=1 // pred_region
      _
    $region25: #{discriminator_forward.1} parent=1 // pred_fallthru
      _
    // Predicated region
    $region26: #{discriminator_forward.1} parent=1 // pred_check
      _
    $region27: #{discriminator_forward.1} parent=1 // pred_check_branch
      %38 = sbr.rel (0) target = $region29
    $region28: #{discriminator_forward.1} parent=1 // pred_region
      _
    $region29: #{discriminator_forward.1} parent=1 // pred_fallthru
      _
    // Predicated region
    $region30: #{discriminator_forward.1} parent=1 // pred_check
      _
    $region31: #{discriminator_forward.1} parent=1 // pred_check_branch
      %40 = sbr.rel (0) target = $region33
    $region32: #{discriminator_forward.1} parent=1 // pred_region
      %41 = dma.done [#allocation4], 8192
    $region33: #{discriminator_forward.1} parent=1 // pred_fallthru
      _
    %v42 = vld [vmem:[%s0] sm:$0xff]
    %v43 = vld [vmem:[%s0 + $0x8] sm:$0xff]
    %v44 = vld [vmem:[%s2] sm:$0xf]
    %v45 = vld [vmem:[%s1] sm:$0xff]
    %v46 = vunpack.c.l.bf16 %v45
    %v47 = vunpack.c.h.bf16 %v45
    %v49 = vlaneseq
    %v50 = vshrl.u32 %v49, 7
    %v51 = vsub.s32 0, %v50
    %v52 = vrot.slane %v44, %v51
    %v53 = vlaneseq
    %v54 = vshrl.u32 %v53, 7
    %v55 = vsub.s32 1, %v54
    %v56 = vrot.slane %v44, %v55
    %v57 = vlaneseq
    %v58 = vshrl.u32 %v57, 7
    %v59 = vsub.s32 2, %v58
    %v60 = vrot.slane %v44, %v59
    %v61 = vlaneseq
    %v62 = vshrl.u32 %v61, 7
    %v63 = vsub.s32 3, %v62
    %v64 = vrot.slane %v44, %v63
    %70 = vset.pattern.permute.xlu0 0
    %71 = vperm.xlu0 %70, %v42
    %v72 = vpop.permute.xlu0 %71
    %75 = vset.pattern.permute.xlu0 0
    %76 = vperm.xlu0 %75, %v43
    %v77 = vpop.permute.xlu0 %76
    %v81 = vlaneseq
    %v82 = vshrl.u32 %v81, 7
    %v83 = vsub.s32 0, %v82
    %v84 = vrot.slane %v46, %v83
    %v85 = vlaneseq
    %v86 = vshrl.u32 %v85, 7
    %v87 = vsub.s32 4, %v86
    %v88 = vrot.slane %v46, %v87
    %v89 = vlaneseq
    %v90 = vshrl.u32 %v89, 7
    %v91 = vsub.s32 0, %v90
    %v92 = vrot.slane %v47, %v91
    %v93 = vlaneseq
    %v94 = vshrl.u32 %v93, 7
    %v95 = vsub.s32 4, %v94
    %v96 = vrot.slane %v47, %v95
    %v101 = vlaneseq
    %v102 = vshrl.u32 %v101, 7
    %v103 = vsub.s32 0, %v102
    %v104 = vrot.slane %v84, %v103
    %v105 = vlaneseq
    %v106 = vshrl.u32 %v105, 7
    %v107 = vsub.s32 0, %v106
    %v108 = vrot.slane %v88, %v107
    %v109 = vlaneseq
    %v110 = vshrl.u32 %v109, 7
    %v111 = vsub.s32 0, %v110
    %v112 = vrot.slane %v92, %v111
    %v113 = vlaneseq
    %v114 = vshrl.u32 %v113, 7
    %v115 = vsub.s32 0, %v114
    %v116 = vrot.slane %v96, %v115
    %v117 = vmul.f32 %v72, %v104
    %v118 = vmul.f32 %v72, %v108
    %v119 = vmul.f32 %v72, %v112
    %v120 = vmul.f32 %v72, %v116
    %v121 = vmul.f32 %v77, %v104
    %v122 = vmul.f32 %v77, %v108
    %v123 = vmul.f32 %v77, %v112
    %v124 = vmul.f32 %v77, %v116
    %v125 = vadd.f32 %v52, %v117
    %v126 = vadd.f32 %v56, %v118
    %v127 = vadd.f32 %v60, %v119
    %v128 = vadd.f32 %v64, %v120
    %v129 = vadd.f32 %v52, %v121
    %v130 = vadd.f32 %v56, %v122
    %v131 = vadd.f32 %v60, %v123
    %v132 = vadd.f32 %v64, %v124
    %133 = vset.pattern.permute.xlu0 1
    %134 = vperm.xlu0 %133, %v42
    %v135 = vpop.permute.xlu0 %134
    %137 = vset.pattern.permute.xlu0 1
    %138 = vperm.xlu0 %137, %v43
    %v139 = vpop.permute.xlu0 %138
    %v141 = vlaneseq
    %v142 = vshrl.u32 %v141, 7
    %v143 = vsub.s32 1, %v142
    %v144 = vrot.slane %v46, %v143
    %v145 = vlaneseq
    %v146 = vshrl.u32 %v145, 7
    %v147 = vsub.s32 5, %v146
    %v148 = vrot.slane %v46, %v147
    %v149 = vlaneseq
    %v150 = vshrl.u32 %v149, 7
    %v151 = vsub.s32 1, %v150
    %v152 = vrot.slane %v47, %v151
    %v153 = vlaneseq
    %v154 = vshrl.u32 %v153, 7
    %v155 = vsub.s32 5, %v154
    %v156 = vrot.slane %v47, %v155
    %v161 = vlaneseq
    %v162 = vshrl.u32 %v161, 7
    %v163 = vsub.s32 1, %v162
    %v164 = vrot.slane %v144, %v163
    %v165 = vlaneseq
    %v166 = vshrl.u32 %v165, 7
    %v167 = vsub.s32 1, %v166
    %v168 = vrot.slane %v148, %v167
    %v169 = vlaneseq
    %v170 = vshrl.u32 %v169, 7
    %v171 = vsub.s32 1, %v170
    %v172 = vrot.slane %v152, %v171
    %v173 = vlaneseq
    %v174 = vshrl.u32 %v173, 7
    %v175 = vsub.s32 1, %v174
    %v176 = vrot.slane %v156, %v175
    %v177 = vmul.f32 %v135, %v164
    %v178 = vmul.f32 %v135, %v168
    %v179 = vmul.f32 %v135, %v172
    %v180 = vmul.f32 %v135, %v176
    %v181 = vmul.f32 %v139, %v164
    %v182 = vmul.f32 %v139, %v168
    %v183 = vmul.f32 %v139, %v172
    %v184 = vmul.f32 %v139, %v176
    %v185 = vadd.f32 %v125, %v177
    %v186 = vadd.f32 %v126, %v178
    %v187 = vadd.f32 %v127, %v179
    %v188 = vadd.f32 %v128, %v180
    %v189 = vadd.f32 %v129, %v181
    %v190 = vadd.f32 %v130, %v182
    %v191 = vadd.f32 %v131, %v183
    %v192 = vadd.f32 %v132, %v184
    %193 = vset.pattern.permute.xlu0 2
    %194 = vperm.xlu0 %193, %v42
    %v195 = vpop.permute.xlu0 %194
    %197 = vset.pattern.permute.xlu0 2
    %198 = vperm.xlu0 %197, %v43
    %v199 = vpop.permute.xlu0 %198
    %v201 = vlaneseq
    %v202 = vshrl.u32 %v201, 7
    %v203 = vsub.s32 2, %v202
    %v204 = vrot.slane %v46, %v203
    %v205 = vlaneseq
    %v206 = vshrl.u32 %v205, 7
    %v207 = vsub.s32 6, %v206
    %v208 = vrot.slane %v46, %v207
    %v209 = vlaneseq
    %v210 = vshrl.u32 %v209, 7
    %v211 = vsub.s32 2, %v210
    %v212 = vrot.slane %v47, %v211
    %v213 = vlaneseq
    %v214 = vshrl.u32 %v213, 7
    %v215 = vsub.s32 6, %v214
    %v216 = vrot.slane %v47, %v215
    %v221 = vlaneseq
    %v222 = vshrl.u32 %v221, 7
    %v223 = vsub.s32 2, %v222
    %v224 = vrot.slane %v204, %v223
    %v225 = vlaneseq
    %v226 = vshrl.u32 %v225, 7
    %v227 = vsub.s32 2, %v226
    %v228 = vrot.slane %v208, %v227
    %v229 = vlaneseq
    %v230 = vshrl.u32 %v229, 7
    %v231 = vsub.s32 2, %v230
    %v232 = vrot.slane %v212, %v231
    %v233 = vlaneseq
    %v234 = vshrl.u32 %v233, 7
    %v235 = vsub.s32 2, %v234
    %v236 = vrot.slane %v216, %v235
    %v237 = vmul.f32 %v195, %v224
    %v238 = vmul.f32 %v195, %v228
    %v239 = vmul.f32 %v195, %v232
    %v240 = vmul.f32 %v195, %v236
    %v241 = vmul.f32 %v199, %v224
    %v242 = vmul.f32 %v199, %v228
    %v243 = vmul.f32 %v199, %v232
    %v244 = vmul.f32 %v199, %v236
    %v245 = vadd.f32 %v185, %v237
    %v246 = vadd.f32 %v186, %v238
    %v247 = vadd.f32 %v187, %v239
    %v248 = vadd.f32 %v188, %v240
    %v249 = vadd.f32 %v189, %v241
    %v250 = vadd.f32 %v190, %v242
    %v251 = vadd.f32 %v191, %v243
    %v252 = vadd.f32 %v192, %v244
    %253 = vset.pattern.permute.xlu0 3
    %254 = vperm.xlu0 %253, %v42
    %v255 = vpop.permute.xlu0 %254
    %257 = vset.pattern.permute.xlu0 3
    %258 = vperm.xlu0 %257, %v43
    %v259 = vpop.permute.xlu0 %258
    %v261 = vlaneseq
    %v262 = vshrl.u32 %v261, 7
    %v263 = vsub.s32 3, %v262
    %v264 = vrot.slane %v46, %v263
    %v265 = vlaneseq
    %v266 = vshrl.u32 %v265, 7
    %v267 = vsub.s32 7, %v266
    %v268 = vrot.slane %v46, %v267
    %v269 = vlaneseq
    %v270 = vshrl.u32 %v269, 7
    %v271 = vsub.s32 3, %v270
    %v272 = vrot.slane %v47, %v271
    %v273 = vlaneseq
    %v274 = vshrl.u32 %v273, 7
    %v275 = vsub.s32 7, %v274
    %v276 = vrot.slane %v47, %v275
    %v281 = vlaneseq
    %v282 = vshrl.u32 %v281, 7
    %v283 = vsub.s32 3, %v282
    %v284 = vrot.slane %v264, %v283
    %v285 = vlaneseq
    %v286 = vshrl.u32 %v285, 7
    %v287 = vsub.s32 3, %v286
    %v288 = vrot.slane %v268, %v287
    %v289 = vlaneseq
    %v290 = vshrl.u32 %v289, 7
    %v291 = vsub.s32 3, %v290
    %v292 = vrot.slane %v272, %v291
    %v293 = vlaneseq
    %v294 = vshrl.u32 %v293, 7
    %v295 = vsub.s32 3, %v294
    %v296 = vrot.slane %v276, %v295
    %v297 = vmul.f32 %v255, %v284
    %v298 = vmul.f32 %v255, %v288
    %v299 = vmul.f32 %v255, %v292
    %v300 = vmul.f32 %v255, %v296
    %v301 = vmul.f32 %v259, %v284
    %v302 = vmul.f32 %v259, %v288
    %v303 = vmul.f32 %v259, %v292
    %v304 = vmul.f32 %v259, %v296
    %v305 = vadd.f32 %v245, %v297
    %v306 = vadd.f32 %v246, %v298
    %v307 = vadd.f32 %v247, %v299
    %v308 = vadd.f32 %v248, %v300
    %v309 = vadd.f32 %v249, %v301
    %v310 = vadd.f32 %v250, %v302
    %v311 = vadd.f32 %v251, %v303
    %v312 = vadd.f32 %v252, %v304
    %vm313 = vcmp.ge.f32.partialorder %v305, 0.0
    %vm314 = vcmp.ge.f32.partialorder %v306, 0.0
    %vm315 = vcmp.ge.f32.partialorder %v307, 0.0
    %vm316 = vcmp.ge.f32.partialorder %v308, 0.0
    %vm317 = vcmp.ge.f32.partialorder %v309, 0.0
    %vm318 = vcmp.ge.f32.partialorder %v310, 0.0
    %vm319 = vcmp.ge.f32.partialorder %v311, 0.0
    %vm320 = vcmp.ge.f32.partialorder %v312, 0.0
    %v321 = vmul.f32 %v305, 0.2
    %v322 = vmul.f32 %v306, 0.2
    %v323 = vmul.f32 %v307, 0.2
    %v324 = vmul.f32 %v308, 0.2
    %v325 = vmul.f32 %v309, 0.2
    %v326 = vmul.f32 %v310, 0.2
    %v327 = vmul.f32 %v311, 0.2
    %v328 = vmul.f32 %v312, 0.2
    %v329 = vsel %vm313, %v305, %v321
    %v330 = vsel %vm314, %v306, %v322
    %v331 = vsel %vm315, %v307, %v323
    %v332 = vsel %vm316, %v308, %v324
    %v333 = vsel %vm317, %v309, %v325
    %v334 = vsel %vm318, %v310, %v326
    %v335 = vsel %vm319, %v311, %v327
    %v336 = vsel %vm320, %v312, %v328
    %v337 = vpack.c.bf16 %v333, %v329
    %v338 = vpack.c.bf16 %v334, %v330
    %v339 = vpack.c.bf16 %v335, %v331
    %v340 = vpack.c.bf16 %v336, %v332
    %v341 = vld [vmem:[#allocation3] sm:$0xff]
    %v342 = vld [vmem:[#allocation3 + $0x8] sm:$0xff]
    %v343 = vld [vmem:[#allocation3 + $0x10] sm:$0xff]
    %v344 = vld [vmem:[#allocation3 + $0x18] sm:$0xff]
    %v345 = vld [vmem:[#allocation3 + $0x20] sm:$0xff]
    %v346 = vld [vmem:[#allocation3 + $0x28] sm:$0xff]
    %v347 = vld [vmem:[#allocation3 + $0x30] sm:$0xff]
    %v348 = vld [vmem:[#allocation3 + $0x38] sm:$0xff]
    %v349 = vld [vmem:[#allocation3 + $0x40] sm:$0xff]
    %v350 = vld [vmem:[#allocation3 + $0x48] sm:$0xff]
    %v351 = vld [vmem:[#allocation3 + $0x50] sm:$0xff]
    %v352 = vld [vmem:[#allocation3 + $0x58] sm:$0xff]
    %v353 = vld [vmem:[#allocation3 + $0x60] sm:$0xff]
    %v354 = vld [vmem:[#allocation3 + $0x68] sm:$0xff]
    %v355 = vld [vmem:[#allocation3 + $0x70] sm:$0xff]
    %v356 = vld [vmem:[#allocation3 + $0x78] sm:$0xff]
    %v357 = vld [vmem:[#allocation3 + $0x80] sm:$0xff]
    %v358 = vld [vmem:[#allocation3 + $0x88] sm:$0xff]
    %v359 = vld [vmem:[#allocation3 + $0x90] sm:$0xff]
    %v360 = vld [vmem:[#allocation3 + $0x98] sm:$0xff]
    %v361 = vld [vmem:[#allocation3 + $0xa0] sm:$0xff]
    %v362 = vld [vmem:[#allocation3 + $0xa8] sm:$0xff]
    %v363 = vld [vmem:[#allocation3 + $0xb0] sm:$0xff]
    %v364 = vld [vmem:[#allocation3 + $0xb8] sm:$0xff]
    %v365 = vld [vmem:[#allocation3 + $0xc0] sm:$0xff]
    %v366 = vld [vmem:[#allocation3 + $0xc8] sm:$0xff]
    %v367 = vld [vmem:[#allocation3 + $0xd0] sm:$0xff]
    %v368 = vld [vmem:[#allocation3 + $0xd8] sm:$0xff]
    %v369 = vld [vmem:[#allocation3 + $0xe0] sm:$0xff]
    %v370 = vld [vmem:[#allocation3 + $0xe8] sm:$0xff]
    %v371 = vld [vmem:[#allocation3 + $0xf0] sm:$0xff]
    %v372 = vld [vmem:[#allocation3 + $0xf8] sm:$0xff]
    %v373 = vld [vmem:[#allocation3 + $0x100] sm:$0xff]
    %v374 = vld [vmem:[#allocation3 + $0x108] sm:$0xff]
    %v375 = vld [vmem:[#allocation3 + $0x110] sm:$0xff]
    %v376 = vld [vmem:[#allocation3 + $0x118] sm:$0xff]
    %v377 = vld [vmem:[#allocation3 + $0x120] sm:$0xff]
    %v378 = vld [vmem:[#allocation3 + $0x128] sm:$0xff]
    %v379 = vld [vmem:[#allocation3 + $0x130] sm:$0xff]
    %v380 = vld [vmem:[#allocation3 + $0x138] sm:$0xff]
    %v381 = vld [vmem:[#allocation3 + $0x140] sm:$0xff]
    %v382 = vld [vmem:[#allocation3 + $0x148] sm:$0xff]
    %v383 = vld [vmem:[#allocation3 + $0x150] sm:$0xff]
    %v384 = vld [vmem:[#allocation3 + $0x158] sm:$0xff]
    %v385 = vld [vmem:[#allocation3 + $0x160] sm:$0xff]
    %v386 = vld [vmem:[#allocation3 + $0x168] sm:$0xff]
    %v387 = vld [vmem:[#allocation3 + $0x170] sm:$0xff]
    %v388 = vld [vmem:[#allocation3 + $0x178] sm:$0xff]
    %v389 = vld [vmem:[#allocation3 + $0x180] sm:$0xff]
    %v390 = vld [vmem:[#allocation3 + $0x188] sm:$0xff]
    %v391 = vld [vmem:[#allocation3 + $0x190] sm:$0xff]
    %v392 = vld [vmem:[#allocation3 + $0x198] sm:$0xff]
    %v393 = vld [vmem:[#allocation3 + $0x1a0] sm:$0xff]
    %v394 = vld [vmem:[#allocation3 + $0x1a8] sm:$0xff]
    %v395 = vld [vmem:[#allocation3 + $0x1b0] sm:$0xff]
    %v396 = vld [vmem:[#allocation3 + $0x1b8] sm:$0xff]
    %v397 = vld [vmem:[#allocation3 + $0x1c0] sm:$0xff]
    %v398 = vld [vmem:[#allocation3 + $0x1c8] sm:$0xff]
    %v399 = vld [vmem:[#allocation3 + $0x1d0] sm:$0xff]
    %v400 = vld [vmem:[#allocation3 + $0x1d8] sm:$0xff]
    %v401 = vld [vmem:[#allocation3 + $0x1e0] sm:$0xff]
    %v402 = vld [vmem:[#allocation3 + $0x1e8] sm:$0xff]
    %v403 = vld [vmem:[#allocation3 + $0x1f0] sm:$0xff]
    %v404 = vld [vmem:[#allocation3 + $0x1f8] sm:$0xff]
    %v405 = vld [vmem:[%s4] sm:$0x3]
    %v407 = vlaneseq
    %v408 = vshrl.u32 %v407, 7
    %v409 = vsub.s32 0, %v408
    %v410 = vrot.slane %v405, %v409
    %v411 = vlaneseq
    %v412 = vshrl.u32 %v411, 7
    %v413 = vsub.s32 1, %v412
    %v414 = vrot.slane %v405, %v413
    %v481 = vunpack.c.l.b16 %v341
    %v482 = vunpack.c.h.b16 %v341
    %v483 = vunpack.c.l.b16 %v342
    %v484 = vunpack.c.h.b16 %v342
    %v485 = vunpack.c.l.b16 %v343
    %v486 = vunpack.c.h.b16 %v343
    %v487 = vunpack.c.l.b16 %v344
    %v488 = vunpack.c.h.b16 %v344
    %v489 = vunpack.c.l.b16 %v345
    %v490 = vunpack.c.h.b16 %v345
    %v491 = vunpack.c.l.b16 %v346
    %v492 = vunpack.c.h.b16 %v346
    %v493 = vunpack.c.l.b16 %v347
    %v494 = vunpack.c.h.b16 %v347
    %v495 = vunpack.c.l.b16 %v348
    %v496 = vunpack.c.h.b16 %v348
    %v497 = vunpack.c.l.b16 %v349
    %v498 = vunpack.c.h.b16 %v349
    %v499 = vunpack.c.l.b16 %v350
    %v500 = vunpack.c.h.b16 %v350
    %v501 = vunpack.c.l.b16 %v351
    %v502 = vunpack.c.h.b16 %v351
    %v503 = vunpack.c.l.b16 %v352
    %v504 = vunpack.c.h.b16 %v352
    %v505 = vunpack.c.l.b16 %v353
    %v506 = vunpack.c.h.b16 %v353
    %v507 = vunpack.c.l.b16 %v354
    %v508 = vunpack.c.h.b16 %v354
    %v509 = vunpack.c.l.b16 %v355
    %v510 = vunpack.c.h.b16 %v355
    %v511 = vunpack.c.l.b16 %v356
    %v512 = vunpack.c.h.b16 %v356
    %v513 = vunpack.c.l.b16 %v357
    %v514 = vunpack.c.h.b16 %v357
    %v515 = vunpack.c.l.b16 %v358
    %v516 = vunpack.c.h.b16 %v358
    %v517 = vunpack.c.l.b16 %v359
    %v518 = vunpack.c.h.b16 %v359
    %v519 = vunpack.c.l.b16 %v360
    %v520 = vunpack.c.h.b16 %v360
    %v521 = vunpack.c.l.b16 %v361
    %v522 = vunpack.c.h.b16 %v361
    %v523 = vunpack.c.l.b16 %v362
    %v524 = vunpack.c.h.b16 %v362
    %v525 = vunpack.c.l.b16 %v363
    %v526 = vunpack.c.h.b16 %v363
    %v527 = vunpack.c.l.b16 %v364
    %v528 = vunpack.c.h.b16 %v364
    %v529 = vunpack.c.l.b16 %v365
    %v530 = vunpack.c.h.b16 %v365
    %v531 = vunpack.c.l.b16 %v366
    %v532 = vunpack.c.h.b16 %v366
    %v533 = vunpack.c.l.b16 %v367
    %v534 = vunpack.c.h.b16 %v367
    %v535 = vunpack.c.l.b16 %v368
    %v536 = vunpack.c.h.b16 %v368
    %v537 = vunpack.c.l.b16 %v369
    %v538 = vunpack.c.h.b16 %v369
    %v539 = vunpack.c.l.b16 %v370
    %v540 = vunpack.c.h.b16 %v370
    %v541 = vunpack.c.l.b16 %v371
    %v542 = vunpack.c.h.b16 %v371
    %v543 = vunpack.c.l.b16 %v372
    %v544 = vunpack.c.h.b16 %v372
    %v545 = vunpack.c.l.b16 %v373
    %v546 = vunpack.c.h.b16 %v373
    %v547 = vunpack.c.l.b16 %v374
    %v548 = vunpack.c.h.b16 %v374
    %v549 = vunpack.c.l.b16 %v375
    %v550 = vunpack.c.h.b16 %v375
    %v551 = vunpack.c.l.b16 %v376
    %v552 = vunpack.c.h.b16 %v376
    %v553 = vunpack.c.l.b16 %v377
    %v554 = vunpack.c.h.b16 %v377
    %v555 = vunpack.c.l.b16 %v378
    %v556 = vunpack.c.h.b16 %v378
    %v557 = vunpack.c.l.b16 %v379
    %v558 = vunpack.c.h.b16 %v379
    %v559 = vunpack.c.l.b16 %v380
    %v560 = vunpack.c.h.b16 %v380
    %v561 = vunpack.c.l.b16 %v381
    %v562 = vunpack.c.h.b16 %v381
    %v563 = vunpack.c.l.b16 %v382
    %v564 = vunpack.c.h.b16 %v382
    %v565 = vunpack.c.l.b16 %v383
    %v566 = vunpack.c.h.b16 %v383
    %v567 = vunpack.c.l.b16 %v384
    %v568 = vunpack.c.h.b16 %v384
    %v569 = vunpack.c.l.b16 %v385
    %v570 = vunpack.c.h.b16 %v385
    %v571 = vunpack.c.l.b16 %v386
    %v572 = vunpack.c.h.b16 %v386
    %v573 = vunpack.c.l.b16 %v387
    %v574 = vunpack.c.h.b16 %v387
    %v575 = vunpack.c.l.b16 %v388
    %v576 = vunpack.c.h.b16 %v388
    %v577 = vunpack.c.l.b16 %v389
    %v578 = vunpack.c.h.b16 %v389
    %v579 = vunpack.c.l.b16 %v390
    %v580 = vunpack.c.h.b16 %v390
    %v581 = vunpack.c.l.b16 %v391
    %v582 = vunpack.c.h.b16 %v391
    %v583 = vunpack.c.l.b16 %v392
    %v584 = vunpack.c.h.b16 %v392
    %v585 = vunpack.c.l.b16 %v393
    %v586 = vunpack.c.h.b16 %v393
    %v587 = vunpack.c.l.b16 %v394
    %v588 = vunpack.c.h.b16 %v394
    %v589 = vunpack.c.l.b16 %v395
    %v590 = vunpack.c.h.b16 %v395
    %v591 = vunpack.c.l.b16 %v396
    %v592 = vunpack.c.h.b16 %v396
    %v593 = vunpack.c.l.b16 %v397
    %v594 = vunpack.c.h.b16 %v397
    %v595 = vunpack.c.l.b16 %v398
    %v596 = vunpack.c.h.b16 %v398
    %v597 = vunpack.c.l.b16 %v399
    %v598 = vunpack.c.h.b16 %v399
    %v599 = vunpack.c.l.b16 %v400
    %v600 = vunpack.c.h.b16 %v400
    %v601 = vunpack.c.l.b16 %v401
    %v602 = vunpack.c.h.b16 %v401
    %v603 = vunpack.c.l.b16 %v402
    %v604 = vunpack.c.h.b16 %v402
    %v605 = vunpack.c.l.b16 %v403
    %v606 = vunpack.c.h.b16 %v403
    %v607 = vunpack.c.l.b16 %v404
    %v608 = vunpack.c.h.b16 %v404
    %v609 = vpack.c.b16 %v483, %v481
    %v610 = vpack.c.b16 %v484, %v482
    %v611 = vpack.c.b16 %v487, %v485
    %v612 = vpack.c.b16 %v488, %v486
    %v613 = vpack.c.b16 %v491, %v489
    %v614 = vpack.c.b16 %v492, %v490
    %v615 = vpack.c.b16 %v495, %v493
    %v616 = vpack.c.b16 %v496, %v494
    %v617 = vpack.c.b16 %v499, %v497
    %v618 = vpack.c.b16 %v500, %v498
    %v619 = vpack.c.b16 %v503, %v501
    %v620 = vpack.c.b16 %v504, %v502
    %v621 = vpack.c.b16 %v507, %v505
    %v622 = vpack.c.b16 %v508, %v506
    %v623 = vpack.c.b16 %v511, %v509
    %v624 = vpack.c.b16 %v512, %v510
    %v625 = vpack.c.b16 %v515, %v513
    %v626 = vpack.c.b16 %v516, %v514
    %v627 = vpack.c.b16 %v519, %v517
    %v628 = vpack.c.b16 %v520, %v518
    %v629 = vpack.c.b16 %v523, %v521
    %v630 = vpack.c.b16 %v524, %v522
    %v631 = vpack.c.b16 %v527, %v525
    %v632 = vpack.c.b16 %v528, %v526
    %v633 = vpack.c.b16 %v531, %v529
    %v634 = vpack.c.b16 %v532, %v530
    %v635 = vpack.c.b16 %v535, %v533
    %v636 = vpack.c.b16 %v536, %v534
    %v637 = vpack.c.b16 %v539, %v537
    %v638 = vpack.c.b16 %v540, %v538
    %v639 = vpack.c.b16 %v543, %v541
    %v640 = vpack.c.b16 %v544, %v542
    %v641 = vpack.c.b16 %v547, %v545
    %v642 = vpack.c.b16 %v548, %v546
    %v643 = vpack.c.b16 %v551, %v549
    %v644 = vpack.c.b16 %v552, %v550
    %v645 = vpack.c.b16 %v555, %v553
    %v646 = vpack.c.b16 %v556, %v554
    %v647 = vpack.c.b16 %v559, %v557
    %v648 = vpack.c.b16 %v560, %v558
    %v649 = vpack.c.b16 %v563, %v561
    %v650 = vpack.c.b16 %v564, %v562
    %v651 = vpack.c.b16 %v567, %v565
    %v652 = vpack.c.b16 %v568, %v566
    %v653 = vpack.c.b16 %v571, %v569
    %v654 = vpack.c.b16 %v572, %v570
    %v655 = vpack.c.b16 %v575, %v573
    %v656 = vpack.c.b16 %v576, %v574
    %v657 = vpack.c.b16 %v579, %v577
    %v658 = vpack.c.b16 %v580, %v578
    %v659 = vpack.c.b16 %v583, %v581
    %v660 = vpack.c.b16 %v584, %v582
    %v661 = vpack.c.b16 %v587, %v585
    %v662 = vpack.c.b16 %v588, %v586
    %v663 = vpack.c.b16 %v591, %v589
    %v664 = vpack.c.b16 %v592, %v590
    %v665 = vpack.c.b16 %v595, %v593
    %v666 = vpack.c.b16 %v596, %v594
    %v667 = vpack.c.b16 %v599, %v597
    %v668 = vpack.c.b16 %v600, %v598
    %v669 = vpack.c.b16 %v603, %v601
    %v670 = vpack.c.b16 %v604, %v602
    %v671 = vpack.c.b16 %v607, %v605
    %v672 = vpack.c.b16 %v608, %v606
    %737 = vmatprep.subr.bf16.mxu0 %v610
    %738 = vmatpush1.bf16.msra.mxu0 %v609
    %739 = vmatprep.subr.bf16.mxu0 %v612
    %740 = vmatpush1.bf16.msra.mxu0 %v611
    %741 = vmatprep.subr.bf16.mxu0 %v614
    %742 = vmatpush1.bf16.msra.mxu0 %v613
    %743 = vmatprep.subr.bf16.mxu0 %v616
    %744 = vmatpush1.bf16.msra.mxu0 %v615
    %745 = vmatprep.subr.bf16.mxu0 %v618
    %746 = vmatpush1.bf16.msra.mxu0 %v617
    %747 = vmatprep.subr.bf16.mxu0 %v620
    %748 = vmatpush1.bf16.msra.mxu0 %v619
    %749 = vmatprep.subr.bf16.mxu0 %v622
    %750 = vmatpush1.bf16.msra.mxu0 %v621
    %751 = vmatprep.subr.bf16.mxu0 %v624
    %752 = vmatpush1.bf16.msra.mxu0 %v623
    %753 = vmatprep.subr.bf16.mxu0 %v626
    %754 = vmatpush1.bf16.msra.mxu0 %v625
    %755 = vmatprep.subr.bf16.mxu0 %v628
    %756 = vmatpush1.bf16.msra.mxu0 %v627
    %757 = vmatprep.subr.bf16.mxu0 %v630
    %758 = vmatpush1.bf16.msra.mxu0 %v629
    %759 = vmatprep.subr.bf16.mxu0 %v632
    %760 = vmatpush1.bf16.msra.mxu0 %v631
    %761 = vmatprep.subr.bf16.mxu0 %v634
    %762 = vmatpush1.bf16.msra.mxu0 %v633
    %763 = vmatprep.subr.bf16.mxu0 %v636
    %764 = vmatpush1.bf16.msra.mxu0 %v635
    %765 = vmatprep.subr.bf16.mxu0 %v638
    %766 = vmatpush1.bf16.msra.mxu0 %v637
    %767 = vmatprep.subr.bf16.mxu0 %v640
    %768 = vmatpush1.bf16.msra.mxu0 %v639
    %769 = vmatprep.mubr.bf16.mxu0 %v338
    %770 = vmatmul.mubr.bf16.gmra.mrb[0].mxu0 %v337
    %v771 = vpop.f32.mrb[0].mxu0
    %v772 = vadd.f32 %v410, %v771
    %v773 = vpop.f32.mrb[0].mxu0
    %v774 = vadd.f32 %v414, %v773
    %v775 = vpop.f32.mrb[0].mxu0
    %v776 = vadd.f32 %v410, %v775
    %v777 = vpop.f32.mrb[0].mxu0
    %v778 = vadd.f32 %v414, %v777
    %779 = vdwg.mxu0
    %780 = vmatprep.subr.bf16.mxu0 %v642
    %781 = vmatpush1.bf16.msra.mxu0 %v641
    %782 = vmatprep.subr.bf16.mxu0 %v644
    %783 = vmatpush1.bf16.msra.mxu0 %v643
    %784 = vmatprep.subr.bf16.mxu0 %v646
    %785 = vmatpush1.bf16.msra.mxu0 %v645
    %786 = vmatprep.subr.bf16.mxu0 %v648
    %787 = vmatpush1.bf16.msra.mxu0 %v647
    %788 = vmatprep.subr.bf16.mxu0 %v650
    %789 = vmatpush1.bf16.msra.mxu0 %v649
    %790 = vmatprep.subr.bf16.mxu0 %v652
    %791 = vmatpush1.bf16.msra.mxu0 %v651
    %792 = vmatprep.subr.bf16.mxu0 %v654
    %793 = vmatpush1.bf16.msra.mxu0 %v653
    %794 = vmatprep.subr.bf16.mxu0 %v656
    %795 = vmatpush1.bf16.msra.mxu0 %v655
    %796 = vmatprep.subr.bf16.mxu0 %v658
    %797 = vmatpush1.bf16.msra.mxu0 %v657
    %798 = vmatprep.subr.bf16.mxu0 %v660
    %799 = vmatpush1.bf16.msra.mxu0 %v659
    %800 = vmatprep.subr.bf16.mxu0 %v662
    %801 = vmatpush1.bf16.msra.mxu0 %v661
    %802 = vmatprep.subr.bf16.mxu0 %v664
    %803 = vmatpush1.bf16.msra.mxu0 %v663
    %804 = vmatprep.subr.bf16.mxu0 %v666
    %805 = vmatpush1.bf16.msra.mxu0 %v665
    %806 = vmatprep.subr.bf16.mxu0 %v668
    %807 = vmatpush1.bf16.msra.mxu0 %v667
    %808 = vmatprep.subr.bf16.mxu0 %v670
    %809 = vmatpush1.bf16.msra.mxu0 %v669
    %810 = vmatprep.subr.bf16.mxu0 %v672
    %811 = vmatpush1.bf16.msra.mxu0 %v671
    %812 = vmatprep.mubr.bf16.mxu0 %v340
    %813 = vmatmul.mubr.bf16.gmra.mrb[0].mxu0 %v339
    %v814 = vpop.f32.mrb[0].mxu0
    %v815 = vadd.f32 %v772, %v814
    %v816 = vpop.f32.mrb[0].mxu0
    %v817 = vadd.f32 %v774, %v816
    %v818 = vpop.f32.mrb[0].mxu0
    %v819 = vadd.f32 %v776, %v818
    %v820 = vpop.f32.mrb[0].mxu0
    %v821 = vadd.f32 %v778, %v820
    %822 = vdwg.mxu0
    %vm823 = vcmp.ge.f32.partialorder %v815, 0.0
    %vm824 = vcmp.ge.f32.partialorder %v817, 0.0
    %vm825 = vcmp.ge.f32.partialorder %v819, 0.0
    %vm826 = vcmp.ge.f32.partialorder %v821, 0.0
    %v827 = vmul.f32 %v815, 0.2
    %v828 = vmul.f32 %v817, 0.2
    %v829 = vmul.f32 %v819, 0.2
    %v830 = vmul.f32 %v821, 0.2
    %v831 = vsel %vm823, %v815, %v827
    %v832 = vsel %vm824, %v817, %v828
    %v833 = vsel %vm825, %v819, %v829
    %v834 = vsel %vm826, %v821, %v830
    %v835 = vld [vmem:[%s5] sm:$0x3]
    %v837 = vlaneseq
    %v838 = vshrl.u32 %v837, 7
    %v839 = vsub.s32 0, %v838
    %v840 = vrot.slane %v835, %v839
    %v841 = vlaneseq
    %v842 = vshrl.u32 %v841, 7
    %v843 = vsub.s32 1, %v842
    %v844 = vrot.slane %v835, %v843
    %v847 = vmul.f32 %v831, %v840
    %v848 = vmul.f32 %v832, %v844
    %v849 = vmul.f32 %v833, %v840
    %v850 = vmul.f32 %v834, %v844
    %v851 = vadd.f32 %v847, %v848
    %852 = vadd.xlane.f32.xlu0 %v851
    %v853 = vpop.xlane.xlu0 %852
    %v854 = vadd.f32 %v849, %v850
    %855 = vadd.xlane.f32.xlu0 %v854
    %v856 = vpop.xlane.xlu0 %855
    %v857 = vld [vmem:[#allocation2] sm:$0x1]
    %v859 = vlaneseq
    %v860 = vshrl.u32 %v859, 7
    %v861 = vsub.s32 0, %v860
    %v862 = vrot.slane %v857, %v861
    %v864 = vadd.f32 %v853, %v862
    %v865 = vadd.f32 %v856, %v862
    %v866 = vmul.f32 %v864, 0.5
    %v867 = vmul.f32 %v865, 0.5
    %v868 = vtanh.pop %v866
    %v869 = vtanh.pop %v867
    %v870 = vadd.f32 %v868, 1.0
    %v871 = vadd.f32 %v869, 1.0
    %v872 = vmul.f32 %v870, 0.5
    %v873 = vmul.f32 %v871, 0.5
    %vm874 = vcmask 7168
    %875 = vst.msk [vmem:[%s7] sm:$0xff] %vm874, %v872
    %876 = vst.msk [vmem:[%s7 + $0x8] sm:$0xff] %vm874, %v873
    // Predicated region
    $region34: #{discriminator_forward.1} parent=1 // pred_check
      _
    $region35: #{discriminator_forward.1} parent=1 // pred_check_branch
      %878 = sbr.rel (0) target = $region37
    $region36: #{discriminator_forward.1} parent=1 // pred_region
      _
    $region37: #{discriminator_forward.1} parent=1 // pred_fallthru
      _
    // Predicated region
    $region38: #{discriminator_forward.1} parent=1 // pred_check
      _
    $region39: #{discriminator_forward.1} parent=1 // pred_check_branch
      %880 = sbr.rel (0) target = $region41
    $region40: #{discriminator_forward.1} parent=1 // pred_region
      _
    $region41: #{discriminator_forward.1} parent=1 // pred_fallthru
      _
    %881 = vsyncpa [#allocation4], 1

</llo_original>
